<compile_context>
chip_gen: v7x
topology: tpu7x:2x2x1
jax: 0.10.0
libtpu: 0.0.40
codegen_flags: <defaults>
</compile_context>

<pallas_src>
import functools
import math

import jax
import jax.numpy as jnp
from jax.experimental import pallas as pl
from jax.experimental.pallas import tpu as pltpu

_ALPHA = 0.5


def _leaky_relu_kernel(x_ref, z_ref, cnt_ref, *, alpha, tn, n_valid, mask_cols):
    k = pl.program_id(1)

    # int32 negative-count accumulator, resident across the feature-axis grid
    # (same output block index for every k); init on the first feature step.
    @pl.when(k == 0)
    def _():
        cnt_ref[...] = jnp.zeros_like(cnt_ref)

    x = x_ref[...]
    nonneg = x >= 0                       # one vcmp, reused for z and the count
    z_ref[...] = jnp.where(nonneg, x, alpha * x).astype(z_ref.dtype)

    neg = jnp.logical_not(nonneg)
    if mask_cols:
        # Ragged feature tail: lanes >= n_valid in the (partial) last block hold
        # undefined data -- exclude them from the count.  (Their z values land in
        # the out-of-bounds part of the output block and are discarded.)
        col = jax.lax.broadcasted_iota(jnp.int32, x.shape, 1) + k * tn
        neg = jnp.logical_and(neg, col < n_valid)
    cnt_ref[...] += jnp.sum(neg.astype(jnp.int32), axis=1, keepdims=True)


def _choose_grouping(B, N):
    """For B < 8, pick G with (B*G) % 8 == 0, N % G == 0 and N // G >= 128."""
    g0 = 8 // math.gcd(B, 8)
    best = 1
    for mult in range(1, 17):
        G = g0 * mult
        if N % G != 0 or (N // G) < 128:
            continue
        if best == 1:
            best = G
        if B * G >= 16:          # enough rows for two row tiles (v7x dual-TC)
            return G
    return best


def leaky_relu_forward(x, alpha=_ALPHA):
    """Pallas implementation of LeakyReLU.forward. Returns (z, logL)."""
    B = x.shape[0]
    N = math.prod(x.shape[1:])

    # Fill sublanes for tiny batches by folding part of the feature axis into
    # rows (free contiguous reshape).  G == 1 when B >= 8 or no clean grouping.
    G = _choose_grouping(B, N) if (0 < B < 8) else 1
    R, Ncol = B * G, N // G
    xf = x.reshape(R, Ncol)

    # Lane-dense feature tile (multiple of 128), <= ~4 MiB per (TB, TN) tile.
    TN = min(4096, pl.cdiv(Ncol, 128) * 128)
    if R >= 8:
        TB = min(256, pl.cdiv(R, 8) * 8)
        if TB >= R and R >= 16:
            # Split into (at least) two row tiles so the "parallel" row axis can
            # be sharded across both v7x TensorCores.
            TB = max(8, ((R // 2 + 7) // 8) * 8)
    else:
        TB = R   # < 8 rows and no grouping: row block spans the full batch dim

    grid = (pl.cdiv(R, TB), pl.cdiv(Ncol, TN))
    mask_cols = (Ncol % TN) != 0

    z_flat, counts = pl.pallas_call(
        functools.partial(
            _leaky_relu_kernel,
            alpha=alpha, tn=TN, n_valid=Ncol, mask_cols=mask_cols,
        ),
        out_shape=(
            jax.ShapeDtypeStruct((R, Ncol), x.dtype),
            jax.ShapeDtypeStruct((R, 1), jnp.int32),
        ),
        grid=grid,
        in_specs=[pl.BlockSpec((TB, TN), lambda i, k: (i, k))],
        out_specs=(
            pl.BlockSpec((TB, TN), lambda i, k: (i, k)),
            pl.BlockSpec((TB, 1), lambda i, k: (i, 0)),
        ),
        compiler_params=pltpu.CompilerParams(
            dimension_semantics=("parallel", "arbitrary"),
            vmem_limit_bytes=32 * 1024 * 1024,
        ),
    )(xf)

    z = z_flat.reshape(x.shape)
    # Tiny (B, G) reduce + constant scale; exact int count -> no f32 drift.
    neg_per_sample = counts.reshape(B, G).sum(axis=1)
    logl = neg_per_sample.astype(jnp.float32) * jnp.float32(math.log(alpha))
    return z, logl


def _reference_forward(x, alpha=_ALPHA):
    z = jnp.where(x >= 0, x, alpha * x)
    D = (x >= 0).astype(jnp.float32) + alpha * (x < 0).astype(jnp.float32)
    logL = jnp.log(D).reshape(x.shape[0], -1).sum(axis=1)
    return z, logL


if __name__ == "__main__":
    key = jax.random.PRNGKey(0)
    # NCHW input, small shapes: batch=2, channels=4, spatial=16x16.
    x = jax.random.normal(key, (2, 4, 16, 16), dtype=jnp.float32)

    z, logl = leaky_relu_forward(x)
    jax.block_until_ready((z, logl))

    z_ref, logl_ref = _reference_forward(x)
    assert z.shape == x.shape and logl.shape == (x.shape[0],)
    assert jnp.allclose(z, z_ref, atol=1e-6), "z mismatch"
    assert jnp.allclose(logl, logl_ref, rtol=1e-5, atol=1e-3), "logL mismatch"

    print("KERNEL_OK")
</pallas_src>

<mosaic_0001>
module attributes {stable_mosaic.version = 11 : i64} {
  func.func @_leaky_relu_kernel(%arg0: i32, %arg1: i32, %arg2: memref<8x128xf32, #tpu.memory_space<vmem>>, %arg3: memref<8x128xf32, #tpu.memory_space<vmem>>, %arg4: memref<8x1xi32, #tpu.memory_space<vmem>>) attributes {dimension_semantics = [#tpu.dimension_semantics<parallel>, #tpu.dimension_semantics<arbitrary>], iteration_bounds = array<i64: 2, 1>, scalar_prefetch = 0 : i64, scratch_operands = 0 : i64, tpu.core_type = #tpu.core_type<tc>, window_params = [{transform_indices = @transform_0, window_bounds = array<i64: 8, 128>}, {transform_indices = @transform_1, window_bounds = array<i64: 8, 128>}, {transform_indices = @transform_2, window_bounds = array<i64: 8, 1>}]} {
    %c0_i32 = arith.constant 0 : i32
    %0 = arith.cmpi eq, %arg1, %c0_i32 : i32
    %1 = arith.extui %0 : i1 to i32
    %c0_i32_0 = arith.constant 0 : i32
    %2 = arith.cmpi ne, %1, %c0_i32_0 : i32
    scf.if %2 {
      %c0_i32_11 = arith.constant 0 : i32
      %17 = vector.broadcast %c0_i32_11 : i32 to vector<8x1xi32>
      %c0_12 = arith.constant 0 : index
      %c0_13 = arith.constant 0 : index
      %18 = vector.load %arg4[%c0_12, %c0_13] : memref<8x1xi32, #tpu.memory_space<vmem>>, vector<8x1xi32>
      tpu.vector_store %arg4[%c0_12, %c0_13], %17 {strides = array<i32>} : memref<8x1xi32, #tpu.memory_space<vmem>>, vector<8x1xi32>,
    } else {
    }
    %c0 = arith.constant 0 : index
    %c0_1 = arith.constant 0 : index
    %3 = vector.load %arg2[%c0, %c0_1] : memref<8x128xf32, #tpu.memory_space<vmem>>, vector<8x128xf32>
    %cst = arith.constant 0.000000e+00 : f32
    %4 = vector.broadcast %cst : f32 to vector<8x128xf32>
    %5 = arith.cmpf oge, %3, %4 : vector<8x128xf32>
    %cst_2 = arith.constant 5.000000e-01 : f32
    %6 = vector.broadcast %cst_2 : f32 to vector<8x128xf32>
    %7 = arith.mulf %6, %3 : vector<8x128xf32>
    %8 = arith.select %5, %3, %7 : vector<8x128xi1>, vector<8x128xf32>
    %c0_3 = arith.constant 0 : index
    %c0_4 = arith.constant 0 : index
    %9 = vector.load %arg3[%c0_3, %c0_4] : memref<8x128xf32, #tpu.memory_space<vmem>>, vector<8x128xf32>
    tpu.vector_store %arg3[%c0_3, %c0_4], %8 {strides = array<i32>} : memref<8x128xf32, #tpu.memory_space<vmem>>, vector<8x128xf32>,
    %cst_5 = arith.constant dense<true> : vector<8x128xi1>
    %10 = arith.xori %5, %cst_5 : vector<8x128xi1>
    %c0_6 = arith.constant 0 : index
    %c0_7 = arith.constant 0 : index
    %11 = vector.load %arg4[%c0_6, %c0_7] : memref<8x1xi32, #tpu.memory_space<vmem>>, vector<8x1xi32>
    %12 = arith.extui %10 : vector<8x128xi1> to vector<8x128xi32>
    %cst_8 = arith.constant dense<0> : vector<8xi32>
    %13 = vector.multi_reduction <add>, %12, %cst_8 [1] : vector<8x128xi32> to vector<8xi32>
    %14 = vector.shape_cast %13 : vector<8xi32> to vector<8x1xi32>
    %15 = arith.addi %11, %14 : vector<8x1xi32>
    %c0_9 = arith.constant 0 : index
    %c0_10 = arith.constant 0 : index
    %16 = vector.load %arg4[%c0_9, %c0_10] : memref<8x1xi32, #tpu.memory_space<vmem>>, vector<8x1xi32>
    tpu.vector_store %arg4[%c0_9, %c0_10], %15 {strides = array<i32>} : memref<8x1xi32, #tpu.memory_space<vmem>>, vector<8x1xi32>,
    return
  }
  func.func @transform_0(%arg0: i32, %arg1: i32) -> (i32, i32) {
    %c0_i32 = arith.constant 0 : i32
    return %arg0, %arg1 : i32, i32
  }
  func.func @transform_1(%arg0: i32, %arg1: i32) -> (i32, i32) {
    %c0_i32 = arith.constant 0 : i32
    return %arg0, %arg1 : i32, i32
  }
  func.func @transform_2(%arg0: i32, %arg1: i32) -> (i32, i32) {
    %c0_i32 = arith.constant 0 : i32
    %c0_i32_0 = arith.constant 0 : i32
    return %arg0, %c0_i32 : i32, i32
  }
}

</mosaic_0001>

<llo_original>
// kernel: tpu_custom_call.1
$region0: #{tpu_custom_call.1}
  #allocation0 [shape = 'u32[]', space=smem, size = 0x4, offset = 0x4, fixed_abs, tag = 'smem constant byte address 0x4 - core index']
  #allocation1 [shape = 'u32[144,128]{1,0:T(1,128)}', space=vmem, size = 0x12000, scoped, tag = 'internal scratch']
  %s0 = inlined_call_operand.hbm [shape: f32[16,128], index: 0, kind: input, shape index: {}]
  %s1 = inlined_call_operand.hbm [shape: f32[16,128], index: 1, kind: output, shape index: {0}]
  %s2 = inlined_call_operand.vmem [shape: s32[16,1], index: 2, kind: output, shape index: {1}]
  %3 = xla_tuple %s1, %s2
  %s4 = sld [smem:[#allocation0]]
  $region53: #{tpu_custom_call.1} parent=0
    _
  %s6 = ssub.s32 1, %s4
  %s7 = scalar_select 0, %s6, %s4
  $region1: #{tpu_custom_call.1} parent=0
    #allocation2 [shape = 'u8[8192]{0}', space=vmem, size = 0x2000, scoped, tag = 'input window, operand 0']
    #allocation3 [shape = 's32[2]{0}', space=sflag, size = 0x8, scoped, tag = 'scoped memory for tpu_custom_call.1']
    #allocation4 [shape = 's32[2]{0}', space=sflag, size = 0x8, scoped, tag = 'scoped memory for tpu_custom_call.1']
    #allocation5 [shape = 'u8[8192]{0}', space=vmem, size = 0x2000, scoped, tag = 'output window, operand 0']
    %8 = vsyncpa [#allocation3], 0
    %s9 = scalar_lea.sflag [#allocation3], 1
    %10 = vsyncpa %s9, 0
    %11 = vsyncpa [#allocation4], 0
    %s12 = scalar_lea.sflag [#allocation4], 1
    %13 = vsyncpa %s12, 0
    loop: start=0, step=1, limit=4
    $region2: #{tpu_custom_call.1} parent=1 // loop_pre_header
      _
    $region3: #{tpu_custom_call.1} parent=1 // loop_header
      %s15 = sphi 0, %s19
      %p16 = scmp.ge.s32.totalorder %s15, 4
      %s22 = sphi 0, %s34
      %s23 = sphi 0, %s30
      %s24 = sphi 0, %s22
      %s25 = sphi 0, %s23
      %s26 = sphi 0, %s24
      %s27 = sphi 0, %s25
      %s39 = sphi 0, %s41
      %s42 = sphi 0, %s39
      %s43 = sphi 0, %s42
      %s59 = sphi 0, %s43
      %s67 = sphi 0, %s69
      %s70 = sphi 0, %s67
      %s71 = sphi 0, %s70
      %s87 = sphi 0, %s71
      %s93 = sphi 0, %s95
      %s96 = sphi 0, %s93
      %s97 = sphi 0, %s96
      %s113 = sphi 0, %s97
    $region4: #{tpu_custom_call.1} parent=1 // loop_header_branch
      %18 = sbr.rel (%p16) target = $region8
    $region5: #{tpu_custom_call.1} parent=1 // loop_body
      %s20 = ssub.s32 %s15, 1
      %s21 = ssub.s32 %s15, 2
      %s28 = sadd.s32 1, %s23
      %p29 = scmp.ge.s32.totalorder %s28, 1
      %s30 = scalar_select %p29, 0, %s28
      %s31 = sadd.s32 1, %s22
      %s32 = scalar_select %p29, %s31, %s22
      %p33 = scmp.ge.s32.totalorder %s32, 2
      %s34 = scalar_select %p33, 0, %s32
      %s35 = ssub.s32 %s22, %s34
      %s36 = ssub.s32 %s23, %s30
      %s37 = sor.u32 %s35, %s36
      %p38 = scmp.eq.s32.totalorder %s37, 0
      %s40 = sadd.s32 %s39, 1
      %s41 = scalar_select %p38, %s39, %s40
      %p44 = pneg %p38
      %p45 = scmp.eq.s32.totalorder %s15, 1
      %p46 = por %p44, %p45
      %p47 = scmp.ne.s32.totalorder %s39, %s42
      %p48 = scmp.eq.s32.totalorder %s15, 0
      %p49 = por %p47, %p48
      %p50 = scmp.ne.s32.totalorder %s39, %s42
      %p51 = scmp.eq.s32.totalorder %s20, 1
      %p52 = por %p50, %p51
      %p53 = scmp.ne.s32.totalorder %s42, %s43
      %p54 = scmp.eq.s32.totalorder %s20, 0
      %p55 = por %p53, %p54
      %p56 = scmp.ne.s32.totalorder %s42, %s43
      %p57 = scmp.eq.s32.totalorder %s21, 1
      %p58 = por %p56, %p57
      %p60 = scmp.ne.s32.totalorder %s43, %s59
      %p61 = scmp.eq.s32.totalorder %s21, 0
      %p62 = por %p60, %p61
      %s63 = ssub.s32 %s22, %s34
      %s64 = ssub.s32 %s23, %s30
      %s65 = sor.u32 %s63, %s64
      %p66 = scmp.eq.s32.totalorder %s65, 0
      %s68 = sadd.s32 %s67, 1
      %s69 = scalar_select %p66, %s67, %s68
      %p72 = pneg %p66
      %p73 = scmp.eq.s32.totalorder %s15, 1
      %p74 = por %p72, %p73
      %p75 = scmp.ne.s32.totalorder %s67, %s70
      %p76 = scmp.eq.s32.totalorder %s15, 0
      %p77 = por %p75, %p76
      %p78 = scmp.ne.s32.totalorder %s67, %s70
      %p79 = scmp.eq.s32.totalorder %s20, 1
      %p80 = por %p78, %p79
      %p81 = scmp.ne.s32.totalorder %s70, %s71
      %p82 = scmp.eq.s32.totalorder %s20, 0
      %p83 = por %p81, %p82
      %p84 = scmp.ne.s32.totalorder %s70, %s71
      %p85 = scmp.eq.s32.totalorder %s21, 1
      %p86 = por %p84, %p85
      %p88 = scmp.ne.s32.totalorder %s71, %s87
      %p89 = scmp.eq.s32.totalorder %s21, 0
      %p90 = por %p88, %p89
      %s91 = ssub.s32 %s22, %s34
      %p92 = scmp.eq.s32.totalorder %s91, 0
      %s94 = sadd.s32 %s93, 1
      %s95 = scalar_select %p92, %s93, %s94
      %p98 = pneg %p92
      %p99 = scmp.eq.s32.totalorder %s15, 1
      %p100 = por %p98, %p99
      %p101 = scmp.ne.s32.totalorder %s93, %s96
      %p102 = scmp.eq.s32.totalorder %s15, 0
      %p103 = por %p101, %p102
      %p104 = scmp.ne.s32.totalorder %s93, %s96
      %p105 = scmp.eq.s32.totalorder %s20, 1
      %p106 = por %p104, %p105
      %p107 = scmp.ne.s32.totalorder %s96, %s97
      %p108 = scmp.eq.s32.totalorder %s20, 0
      %p109 = por %p107, %p108
      %p110 = scmp.ne.s32.totalorder %s96, %s97
      %p111 = scmp.eq.s32.totalorder %s21, 1
      %p112 = por %p110, %p111
      %p114 = scmp.ne.s32.totalorder %s97, %s113
      %p115 = scmp.eq.s32.totalorder %s21, 0
      %p116 = por %p114, %p115
      %p117 = scmp.le.s32.totalorder 1, %s15
      %p118 = scmp.lt.s32.totalorder %s15, 3
      %p119 = pnand %p117, %p118
      %p120 = pneg %p119
      // Predicated region
      $region9: #{tpu_custom_call.1} parent=5 // pred_check
        _
      $region10: #{tpu_custom_call.1} parent=5 // pred_check_branch
        %122 = sbr.rel (%p119) target = $region12
      $region11: #{tpu_custom_call.1} parent=5 // pred_region
        %s123 = ssub.s32 %s15, 1
      $region12: #{tpu_custom_call.1} parent=5 // pred_fallthru
        _
      %p124 = scmp.lt.s32.totalorder %s15, 2
      // Predicated region
      $region13: #{tpu_custom_call.1} parent=5 // pred_check
        %p125 = pneg %p124
      $region14: #{tpu_custom_call.1} parent=5 // pred_check_branch
        %127 = sbr.rel (%p125) target = $region16
      $region15: #{tpu_custom_call.1} parent=5 // pred_region
        // Predicated region
        $region17: #{tpu_custom_call.1} parent=15 // pred_check
          %p128 = pneg %p49
        $region18: #{tpu_custom_call.1} parent=15 // pred_check_branch
          %130 = sbr.rel (%p128) target = $region20
        $region19: #{tpu_custom_call.1} parent=15 // pred_region
          %s131 = sand.u32 %s39, 1
          %s132 = scalar_lea.sflag [#allocation3], %s131
          %s133 = sand.u32 %s39, 1
          %s134 = smul.addr %s133, 8
          %s135 = scalar_lea.vmem [#allocation2], %s134
          %s137 = ssub.s32 128, 128
          %138 = vsyncadd %s132, %s137
          %s139 = sadd.s32 %s23, %s22
          %s140 = smul.addr %s139, 128
          %s141 = scalar_lea.hbm %s0, %s140
          %s143 = sshll.u32 %s135, 4
          %s144 = int_to_ptr.vmem [resolvable:$true] %s143
          %146 = dma.hbm_to_vmem [thread:$0]  %s141, 128, %s144, %s132
        $region20: #{tpu_custom_call.1} parent=15 // pred_fallthru
          _
      $region16: #{tpu_custom_call.1} parent=5 // pred_fallthru
        _
      %p147 = scmp.le.s32.totalorder 1, %s15
      %p148 = scmp.lt.s32.totalorder %s15, 3
      %p149 = pnand %p147, %p148
      %p150 = pneg %p149
      // Predicated region
      $region21: #{tpu_custom_call.1} parent=5 // pred_check
        _
      $region22: #{tpu_custom_call.1} parent=5 // pred_check_branch
        %152 = sbr.rel (%p149) target = $region24
      $region23: #{tpu_custom_call.1} parent=5 // pred_region
        %s153 = ssub.s32 %s15, 1
        %s154 = sand.u32 %s42, 1
        %s155 = scalar_lea.sflag [#allocation3], %s154
        %s156 = sand.u32 %s42, 1
        %s157 = smul.addr %s156, 8
        %s158 = scalar_lea.vmem [#allocation2], %s157
        // Predicated region
        $region25: #{tpu_custom_call.1} parent=23 // pred_check
          %p159 = pneg %p55
        $region26: #{tpu_custom_call.1} parent=23 // pred_check_branch
          %161 = sbr.rel (%p159) target = $region28
        $region27: #{tpu_custom_call.1} parent=23 // pred_region
          %162 = dma.done %s155, 128
        $region28: #{tpu_custom_call.1} parent=23 // pred_fallthru
          _
        %s163 = sand.u32 %s42, 1
        %s164 = scalar_lea.sflag [#allocation3], %s163
        %s165 = sand.u32 %s42, 1
        %s166 = smul.addr %s165, 8
        %s167 = scalar_lea.vmem [#allocation2], %s166
        %p168 = pneg %p55
        %p169 = pneg %p52
        %p170 = pneg %p83
        %p171 = pneg %p80
        %s172 = sand.u32 %s70, 1
        %s173 = scalar_lea.sflag [#allocation4], %s172
        %s174 = sand.u32 %s70, 1
        %s175 = smul.addr %s174, 8
        %s176 = scalar_lea.vmem [#allocation5], %s175
        %p177 = pneg %p109
        %p178 = pneg %p106
        %p179 = scmp.lt.s32.totalorder %s24, 1
        %s180 = scalar_select %p179, %s24, 1
        %s181 = smul.addr %s180, 8
        %s182 = scalar_lea.vmem %s2, %s181
        %p183 = scmp.lt.s32.totalorder %s24, 1
        %s184 = scalar_select %p183, %s24, 1
        %s185 = smul.addr %s184, 8
        %s186 = scalar_lea.vmem %s2, %s185
        %p187 = scmp.eq.s32.totalorder %s25, 0
        // Predicated region
        $region29: #{tpu_custom_call.1} parent=23 // pred_check
          %p188 = pneg %p187
        $region30: #{tpu_custom_call.1} parent=23 // pred_check_branch
          %190 = sbr.rel (%p188) target = $region32
        $region31: #{tpu_custom_call.1} parent=23 // pred_region
          %vm191 = vcmask 7168
          %192 = vst.msk [vmem:[%s186] sm:$0xff] %vm191, 0
        $region32: #{tpu_custom_call.1} parent=23 // pred_fallthru
          _
        %v193 = vld [vmem:[%s158] sm:$0xff]
        %vm194 = vcmp.ge.f32.partialorder %v193, 0.0
        %v195 = vmul.f32 %v193, 0.5
        %v196 = vsel %vm194, %v193, %v195
        %197 = vst [vmem:[%s176] sm:$0xff] %v196
        %vm198 = vmxor %vm194, 1
        %v199 = vld [vmem:[%s186] sm:$0xff]
        %v200 = vsel %vm198, 1, 0
        %v201 = vand.u32 %v200, 65535
        %v202 = vshrl.u32 %v200, 16
        %v203 = vcvt.s32.f32 %v201
        %v204 = vcvt.s32.f32 %v202
        %205 = vadd.xlane.f32.xlu0 %v203
        %v206 = vpop.xlane.xlu0 %205
        %207 = vadd.xlane.f32.xlu0 %v204
        %v208 = vpop.xlane.xlu0 %207
        %v209 = vcvt.f32.s32 %v206
        %v210 = vcvt.f32.s32 %v208
        %v211 = vshll.u32 %v210, 16
        %v212 = vadd.s32 %v211, %v209
        %v213 = vadd.s32 %v199, %v212
        %vm214 = vcmask 7168
        %215 = vst.msk [vmem:[%s186] sm:$0xff] %vm214, %v213
        %s216 = sand.u32 %s70, 1
        %s217 = scalar_lea.sflag [#allocation4], %s216
        %s218 = sand.u32 %s70, 1
        %s219 = smul.addr %s218, 8
        %s220 = scalar_lea.vmem [#allocation5], %s219
        %p221 = scmp.lt.s32.totalorder %s24, 1
        %s222 = scalar_select %p221, %s24, 1
        %s223 = smul.addr %s222, 8
        %s224 = scalar_lea.vmem %s2, %s223
        // Predicated region
        $region33: #{tpu_custom_call.1} parent=23 // pred_check
          %p225 = pneg %p80
        $region34: #{tpu_custom_call.1} parent=23 // pred_check_branch
          %227 = sbr.rel (%p225) target = $region36
        $region35: #{tpu_custom_call.1} parent=23 // pred_region
          %s229 = ssub.s32 128, 128
          %230 = vsyncadd %s217, %s229
          %s231 = sadd.s32 %s25, %s24
          %s232 = smul.addr %s231, 128
          %s233 = scalar_lea.hbm %s1, %s232
          %s235 = sshll.u32 %s220, 4
          %s236 = int_to_ptr.vmem [resolvable:$true] %s235
          %238 = dma.vmem_to_hbm [thread:$0]  %s236, 128, %s233, %s217
        $region36: #{tpu_custom_call.1} parent=23 // pred_fallthru
          _
        // Predicated region
        $region37: #{tpu_custom_call.1} parent=23 // pred_check
          %p239 = pneg %p106
        $region38: #{tpu_custom_call.1} parent=23 // pred_check_branch
          %241 = sbr.rel (%p239) target = $region40
        $region39: #{tpu_custom_call.1} parent=23 // pred_region
          _
        $region40: #{tpu_custom_call.1} parent=23 // pred_fallthru
          _
      $region24: #{tpu_custom_call.1} parent=5 // pred_fallthru
        _
      %p242 = scmp.le.s32.totalorder 2, %s15
      // Predicated region
      $region41: #{tpu_custom_call.1} parent=5 // pred_check
        %p243 = pneg %p242
      $region42: #{tpu_custom_call.1} parent=5 // pred_check_branch
        %245 = sbr.rel (%p243) target = $region44
      $region43: #{tpu_custom_call.1} parent=5 // pred_region
        %s246 = ssub.s32 %s15, 2
        // Predicated region
        $region45: #{tpu_custom_call.1} parent=43 // pred_check
          %p247 = pneg %p86
        $region46: #{tpu_custom_call.1} parent=43 // pred_check_branch
          %249 = sbr.rel (%p247) target = $region48
        $region47: #{tpu_custom_call.1} parent=43 // pred_region
          %s250 = sand.u32 %s71, 1
          %s251 = scalar_lea.sflag [#allocation4], %s250
          %s252 = sand.u32 %s71, 1
          %s253 = smul.addr %s252, 8
          %s254 = scalar_lea.vmem [#allocation5], %s253
          %255 = dma.done %s251, 128
        $region48: #{tpu_custom_call.1} parent=43 // pred_fallthru
          _
        // Predicated region
        $region49: #{tpu_custom_call.1} parent=43 // pred_check
          %p256 = pneg %p112
        $region50: #{tpu_custom_call.1} parent=43 // pred_check_branch
          %258 = sbr.rel (%p256) target = $region52
        $region51: #{tpu_custom_call.1} parent=43 // pred_region
          %p259 = scmp.lt.s32.totalorder %s26, 1
          %s260 = scalar_select %p259, %s26, 1
          %s261 = smul.addr %s260, 8
          %s262 = scalar_lea.vmem %s2, %s261
        $region52: #{tpu_custom_call.1} parent=43 // pred_fallthru
          _
      $region44: #{tpu_custom_call.1} parent=5 // pred_fallthru
        _
    $region6: #{tpu_custom_call.1} parent=1 // loop_footer
      %s19 = sadd.s32 1, %s15
    $region7: #{tpu_custom_call.1} parent=1 // loop_footer_branch
      %14 = sbr.rel target = $region3
    $region8: #{tpu_custom_call.1} parent=1 // loop_exit
      _
    %263 = vsyncpa [#allocation3], 1
    %s264 = scalar_lea.sflag [#allocation3], 1
    %265 = vsyncpa %s264, 1
    %266 = vsyncpa [#allocation4], 1
    %s267 = scalar_lea.sflag [#allocation4], 1
    %268 = vsyncpa %s267, 1

</llo_original>
